<compile_context>
chip_gen: v6e
topology: v6e:2x2x1
jax: 0.10.0
libtpu: 0.0.40
codegen_flags: <defaults>
</compile_context>

<pallas_src>
import functools

import jax
import jax.numpy as jnp
from jax import lax
from jax.experimental import pallas as pl
from jax.experimental.pallas import tpu as pltpu

MARGIN = 2.0
EPS = 1e-6  # F.pairwise_distance default eps (added to the difference)


def _tpu_config():
    """Returns (num_cores, tile_bytes_per_input, vmem_limit_bytes) for the local TPU."""
    default = (1, 4 * 1024 * 1024, 32 * 1024 * 1024)
    try:
        dev = jax.devices()[0]
        if dev.platform != "tpu":
            return default
        kind = str(getattr(dev, "device_kind", "")).lower().replace(" ", "")
        if ("v7" in kind) or ("tpu7" in kind):
            # v7x: 2 TensorCores/chip, 64 MiB physical VMEM (32 MiB scoped default),
            # 3.2 TB/s HBM -> larger tiles + 48 MiB scoped limit + dual-core split.
            return 2, 8 * 1024 * 1024, 48 * 1024 * 1024
        return default
    except Exception:  # never let detection break the kernel
        return default


def _choose_tile_m(batch, feat, itemsize, tile_bytes):
    """Rows per tile so one input tile is ~tile_bytes, rounded to a multiple of 8."""
    tm = tile_bytes // max(1, feat * itemsize)
    tm = max(8, (tm // 8) * 8)
    b_pad8 = ((batch + 7) // 8) * 8
    return min(tm, b_pad8)


def _contrastive_loss_kernel(o1_ref, o2_ref, lab_ref, out_ref, acc_ref, *,
                             batch, tile_m, tiles_per_core, margin, mask_rows):
    c = pl.program_id(0)          # core / partial-sum slot
    i = pl.program_id(1)          # batch-tile index within this core's range

    @pl.when(i == 0)
    def _init():
        acc_ref[0] = jnp.float32(0.0)

    # Stream native dtype; compute in f32 (free VPU cast, halves HBM bytes for bf16).
    o1 = o1_ref[...].astype(jnp.float32)                     # (TM, D)
    o2 = o2_ref[...].astype(jnp.float32)                     # (TM, D)
    lab = lab_ref[...].astype(jnp.float32)                   # (TM, 1)

    diff = o1 - o2 + EPS                                     # eps matches pairwise_distance
    sq_sum = jnp.sum(diff * diff, axis=-1, keepdims=True)    # (TM, 1) == d^2
    dist = jnp.sqrt(sq_sum)                                  # only needed for the hinge

    hinge = jnp.maximum(margin - dist, 0.0)                  # clamp(margin - d, 0)
    per_row = lab * sq_sum + (1.0 - lab) * (hinge * hinge)   # (TM, 1)

    if mask_rows:
        # Zero out rows belonging to the batch zero-padding (load-bearing: padded
        # rows have d ~ 0 and label 0, so each would otherwise add ~margin^2).
        row = ((c * tiles_per_core + i) * tile_m
               + lax.broadcasted_iota(jnp.int32, per_row.shape, 0))
        per_row = jnp.where(row < batch, per_row, 0.0)

    acc_ref[0] += jnp.sum(per_row)

    @pl.when(i == pl.num_programs(1) - 1)
    def _finalize():
        partial = acc_ref[0] * jnp.float32(1.0 / batch)
        out_ref[...] = jnp.zeros(out_ref.shape, jnp.float32) + partial


def contrastive_loss(output1, output2, label, margin=MARGIN, *,
                     tile_bytes=None, num_cores=None, vmem_limit_bytes=None):
    """output1, output2: (B, D); label: (B,) -> scalar f32 loss."""
    B, D = output1.shape

    det_cores, det_tile_bytes, det_vmem = _tpu_config()
    if tile_bytes is None:
        tile_bytes = det_tile_bytes
    if num_cores is None:
        num_cores = det_cores
    if vmem_limit_bytes is None:
        vmem_limit_bytes = det_vmem

    itemsize = jnp.dtype(output1.dtype).itemsize
    tm = _choose_tile_m(B, D, itemsize, tile_bytes)

    n_tiles = (B + tm - 1) // tm
    if n_tiles < num_cores:          # tiny batch: dual-core split buys nothing
        num_cores = 1
    tiles_per_core = (n_tiles + num_cores - 1) // num_cores
    n_tiles = tiles_per_core * num_cores
    b_pad = n_tiles * tm

    label2d = label.reshape(B, 1)
    if b_pad != B:
        pad = b_pad - B
        output1 = jnp.pad(output1, ((0, pad), (0, 0)))
        output2 = jnp.pad(output2, ((0, pad), (0, 0)))
        label2d = jnp.pad(label2d, ((0, pad), (0, 0)))

    kernel = functools.partial(
        _contrastive_loss_kernel, batch=B, tile_m=tm,
        tiles_per_core=tiles_per_core, margin=float(margin),
        mask_rows=(b_pad != B))

    cost = pl.CostEstimate(
        flops=3 * B * D + 8 * B,
        transcendentals=B,
        bytes_accessed=(2 * B * D + B) * itemsize + num_cores * 8 * 128 * 4,
    )

    row_map = lambda c, i: (c * tiles_per_core + i, 0)
    dims = (pltpu.CORE_PARALLEL if num_cores > 1 else pltpu.ARBITRARY,
            pltpu.ARBITRARY)

    out = pl.pallas_call(
        kernel,
        out_shape=jax.ShapeDtypeStruct((num_cores * 8, 128), jnp.float32),
        grid_spec=pltpu.PrefetchScalarGridSpec(
            num_scalar_prefetch=0,
            grid=(num_cores, tiles_per_core),
            in_specs=[
                pl.BlockSpec((tm, D), row_map),
                pl.BlockSpec((tm, D), row_map),
                pl.BlockSpec((tm, 1), row_map),
            ],
            # One (8,128) output block per core (disjoint across the core axis,
            # resident across the reduction axis).
            out_specs=pl.BlockSpec((8, 128), lambda c, i: (c, 0)),
            scratch_shapes=[pltpu.SMEM((1,), jnp.float32)],   # per-core running sum
        ),
        compiler_params=pltpu.CompilerParams(
            dimension_semantics=dims,
            vmem_limit_bytes=vmem_limit_bytes,
        ),
        cost_estimate=cost,
    )(output1, output2, label2d)

    # Each core's (8,128) block is uniformly filled with its (already /B) partial.
    return jnp.sum(out[0::8, 0])


def _reference(output1, output2, label):
    # Pure-JAX reference mirroring the PyTorch forward exactly.
    d = jnp.sqrt(jnp.sum((output1.astype(jnp.float32)
                          - output2.astype(jnp.float32) + EPS) ** 2, axis=-1))
    lab = label.astype(jnp.float32)
    return jnp.mean(lab * d**2 + (1.0 - lab) * jnp.maximum(MARGIN - d, 0.0) ** 2)


if __name__ == "__main__":
    key = jax.random.PRNGKey(0)
    k1, k2, k3 = jax.random.split(key, 3)

    # 1) Aligned small case.
    B, D = 8, 32
    o1 = jax.random.normal(k1, (B, D), dtype=jnp.float32)
    o2 = jax.random.normal(k2, (B, D), dtype=jnp.float32)
    lab = jax.random.bernoulli(k3, 0.5, (B,)).astype(jnp.float32)
    loss = contrastive_loss(o1, o2, lab)
    jax.block_until_ready(loss)
    ref = _reference(o1, o2, lab)
    assert jnp.allclose(loss, ref, rtol=1e-5, atol=1e-5), (loss, ref)

    # 2) Ragged case (exercises padding + in-kernel row masking).
    B2 = 10
    o1r = jax.random.normal(k1, (B2, D), dtype=jnp.float32)
    o2r = jax.random.normal(k2, (B2, D), dtype=jnp.float32)
    labr = jax.random.bernoulli(k3, 0.5, (B2,)).astype(jnp.float32)
    loss_r = contrastive_loss(o1r, o2r, labr)
    jax.block_until_ready(loss_r)
    ref_r = _reference(o1r, o2r, labr)
    assert jnp.allclose(loss_r, ref_r, rtol=1e-5, atol=1e-5), (loss_r, ref_r)

    # 3) Multi-tile streaming path: force a tiny tile so the grid has several steps
    #    (exercises init/accumulate/finalize, and the dual-core split on v7x parts).
    B3 = 40
    o1m = jax.random.normal(k1, (B3, D), dtype=jnp.float32)
    o2m = jax.random.normal(k2, (B3, D), dtype=jnp.float32)
    labm = jax.random.bernoulli(k3, 0.5, (B3,)).astype(jnp.float32)
    loss_m = contrastive_loss(o1m, o2m, labm, tile_bytes=8 * D * 4)
    jax.block_until_ready(loss_m)
    ref_m = _reference(o1m, o2m, labm)
    assert jnp.allclose(loss_m, ref_m, rtol=1e-5, atol=1e-5), (loss_m, ref_m)

    print("KERNEL_OK")
</pallas_src>

<mosaic_0001>
module attributes {stable_mosaic.version = 11 : i64} {
  func.func @_contrastive_loss_kernel(%arg0: i32, %arg1: i32, %arg2: memref<8x32xf32, #tpu.memory_space<vmem>>, %arg3: memref<8x32xf32, #tpu.memory_space<vmem>>, %arg4: memref<8x1xf32, #tpu.memory_space<vmem>>, %arg5: memref<8x128xf32, #tpu.memory_space<vmem>>, %arg6: memref<1xf32, #tpu.memory_space<smem>>) attributes {dimension_semantics = [#tpu.dimension_semantics<arbitrary>, #tpu.dimension_semantics<arbitrary>], iteration_bounds = array<i64: 1, 1>, scalar_prefetch = 0 : i64, scratch_operands = 1 : i64, tpu.core_type = #tpu.core_type<tc>, window_params = [{transform_indices = @transform_0, window_bounds = array<i64: 8, 32>}, {transform_indices = @transform_1, window_bounds = array<i64: 8, 32>}, {transform_indices = @transform_2, window_bounds = array<i64: 8, 1>}, {transform_indices = @transform_3, window_bounds = array<i64: 8, 128>}]} {
    %c0_i32 = arith.constant 0 : i32
    %0 = arith.cmpi eq, %arg1, %c0_i32 : i32
    %1 = arith.extui %0 : i1 to i32
    %c0_i32_0 = arith.constant 0 : i32
    %2 = arith.cmpi ne, %1, %c0_i32_0 : i32
    scf.if %2 {
      %cst_15 = arith.constant 0.000000e+00 : f32
      %c0_16 = arith.constant 0 : index
      %33 = memref.load %arg6[%c0_16] : memref<1xf32, #tpu.memory_space<smem>>
      memref.store %cst_15, %arg6[%c0_16] : memref<1xf32, #tpu.memory_space<smem>>
    } else {
    }
    %c0 = arith.constant 0 : index
    %c0_1 = arith.constant 0 : index
    %3 = vector.load %arg2[%c0, %c0_1] : memref<8x32xf32, #tpu.memory_space<vmem>>, vector<8x32xf32>
    %c0_2 = arith.constant 0 : index
    %c0_3 = arith.constant 0 : index
    %4 = vector.load %arg3[%c0_2, %c0_3] : memref<8x32xf32, #tpu.memory_space<vmem>>, vector<8x32xf32>
    %c0_4 = arith.constant 0 : index
    %c0_5 = arith.constant 0 : index
    %5 = vector.load %arg4[%c0_4, %c0_5] : memref<8x1xf32, #tpu.memory_space<vmem>>, vector<8x1xf32>
    %6 = arith.subf %3, %4 : vector<8x32xf32>
    %cst = arith.constant 9.99999997E-7 : f32
    %7 = vector.broadcast %cst : f32 to vector<8x32xf32>
    %8 = arith.addf %6, %7 : vector<8x32xf32>
    %9 = arith.mulf %8, %8 : vector<8x32xf32>
    %cst_6 = arith.constant dense<0.000000e+00> : vector<8xf32>
    %10 = vector.multi_reduction <add>, %9, %cst_6 [1] : vector<8x32xf32> to vector<8xf32>
    %11 = vector.shape_cast %10 : vector<8xf32> to vector<8x1xf32>
    %12 = math.sqrt %11 : vector<8x1xf32>
    %cst_7 = arith.constant 2.000000e+00 : f32
    %13 = vector.broadcast %cst_7 : f32 to vector<8x1xf32>
    %14 = arith.subf %13, %12 : vector<8x1xf32>
    %cst_8 = arith.constant 0.000000e+00 : f32
    %15 = vector.broadcast %cst_8 : f32 to vector<8x1xf32>
    %16 = arith.maximumf %14, %15 : vector<8x1xf32>
    %17 = arith.mulf %5, %11 : vector<8x1xf32>
    %cst_9 = arith.constant 1.000000e+00 : f32
    %18 = vector.broadcast %cst_9 : f32 to vector<8x1xf32>
    %19 = arith.subf %18, %5 : vector<8x1xf32>
    %20 = arith.mulf %16, %16 : vector<8x1xf32>
    %21 = arith.mulf %19, %20 : vector<8x1xf32>
    %22 = arith.addf %17, %21 : vector<8x1xf32>
    %c0_10 = arith.constant 0 : index
    %23 = memref.load %arg6[%c0_10] : memref<1xf32, #tpu.memory_space<smem>>
    %24 = vector.shape_cast %22 : vector<8x1xf32> to vector<1x8x1xf32>
    %cst_11 = arith.constant dense<0.000000e+00> : vector<1xf32>
    %25 = vector.multi_reduction <add>, %24, %cst_11 [1, 2] : vector<1x8x1xf32> to vector<1xf32>
    %26 = vector.shape_cast %25 : vector<1xf32> to vector<1x1x1xf32>
    %27 = vector.extract %26[0, 0, 0] : f32 from vector<1x1x1xf32>
    %28 = arith.addf %23, %27 : f32
    %c0_12 = arith.constant 0 : index
    %29 = memref.load %arg6[%c0_12] : memref<1xf32, #tpu.memory_space<smem>>
    memref.store %28, %arg6[%c0_12] : memref<1xf32, #tpu.memory_space<smem>>
    %c0_i32_13 = arith.constant 0 : i32
    %30 = arith.cmpi eq, %arg1, %c0_i32_13 : i32
    %31 = arith.extui %30 : i1 to i32
    %c0_i32_14 = arith.constant 0 : i32
    %32 = arith.cmpi ne, %31, %c0_i32_14 : i32
    scf.if %32 {
      %c0_15 = arith.constant 0 : index
      %33 = memref.load %arg6[%c0_15] : memref<1xf32, #tpu.memory_space<smem>>
      %cst_16 = arith.constant 1.250000e-01 : f32
      %34 = arith.mulf %33, %cst_16 : f32
      %cst_17 = arith.constant 0.000000e+00 : f32
      %35 = vector.broadcast %cst_17 : f32 to vector<8x128xf32>
      %36 = vector.broadcast %34 : f32 to vector<8x128xf32>
      %37 = arith.addf %35, %36 : vector<8x128xf32>
      %c0_18 = arith.constant 0 : index
      %c0_19 = arith.constant 0 : index
      %38 = vector.load %arg5[%c0_18, %c0_19] : memref<8x128xf32, #tpu.memory_space<vmem>>, vector<8x128xf32>
      tpu.vector_store %arg5[%c0_18, %c0_19], %37 {strides = array<i32>} : memref<8x128xf32, #tpu.memory_space<vmem>>, vector<8x128xf32>,
    } else {
    }
    return
  }
  func.func @transform_0(%arg0: i32, %arg1: i32) -> (i32, i32) {
    %c1_i32 = arith.constant 1 : i32
    %0 = arith.muli %arg0, %c1_i32 : i32
    %1 = arith.addi %0, %arg1 : i32
    %c0_i32 = arith.constant 0 : i32
    %c0_i32_0 = arith.constant 0 : i32
    return %1, %c0_i32 : i32, i32
  }
  func.func @transform_1(%arg0: i32, %arg1: i32) -> (i32, i32) {
    %c1_i32 = arith.constant 1 : i32
    %0 = arith.muli %arg0, %c1_i32 : i32
    %1 = arith.addi %0, %arg1 : i32
    %c0_i32 = arith.constant 0 : i32
    %c0_i32_0 = arith.constant 0 : i32
    return %1, %c0_i32 : i32, i32
  }
  func.func @transform_2(%arg0: i32, %arg1: i32) -> (i32, i32) {
    %c1_i32 = arith.constant 1 : i32
    %0 = arith.muli %arg0, %c1_i32 : i32
    %1 = arith.addi %0, %arg1 : i32
    %c0_i32 = arith.constant 0 : i32
    %c0_i32_0 = arith.constant 0 : i32
    return %1, %c0_i32 : i32, i32
  }
  func.func @transform_3(%arg0: i32, %arg1: i32) -> (i32, i32) {
    %c0_i32 = arith.constant 0 : i32
    %c0_i32_0 = arith.constant 0 : i32
    return %arg0, %c0_i32 : i32, i32
  }
}

</mosaic_0001>

<llo_original>
// kernel: tpu_custom_call.1
$region0: #{tpu_custom_call.1}
  #allocation0 [shape = 'u32[]', space=smem, size = 0x4, offset = 0x4, fixed_abs, tag = 'smem constant byte address 0x4 - core index']
  #allocation1 [shape = 'u32[144,128]{1,0:T(1,128)}', space=vmem, size = 0x12000, scoped, tag = 'internal scratch']
  #allocation2 [shape = 'f32[1]{0:T(128)}', space=smem, size = 0x200, scoped, tag = 'scratch operand']
  %s0 = inlined_call_operand.vmem [shape: f32[8,32], index: 0, kind: input, shape index: {}]
  %s1 = inlined_call_operand.hbm [shape: f32[8,32], index: 1, kind: input, shape index: {}]
  %s2 = inlined_call_operand.vmem [shape: f32[8,1], index: 2, kind: input, shape index: {}]
  %s3 = inlined_call_operand.hbm [shape: f32[8,128], index: 3, kind: output, shape index: {}]
  %s4 = sld [smem:[#allocation0]]
  $region34: #{tpu_custom_call.1} parent=0
    _
  %s6 = ssub.s32 1, %s4
  %s7 = scalar_select 0, %s6, %s4
  $region1: #{tpu_custom_call.1} parent=0
    #allocation3 [shape = 'u8[4096]{0}', space=vmem, size = 0x1000, scoped, tag = 'input window, operand 1, single buffered']
    #allocation4 [shape = 's32[1]{0}', space=sflag, size = 0x4, scoped, tag = 'scoped memory for tpu_custom_call.1']
    #allocation5 [shape = 's32[1]{0}', space=sflag, size = 0x4, scoped, tag = 'scoped memory for tpu_custom_call.1']
    #allocation6 [shape = 'u8[4096]{0}', space=vmem, size = 0x1000, scoped, tag = 'output window, operand 0, single buffered']
    %8 = vsyncpa [#allocation4], 0
    %9 = vsyncpa [#allocation5], 0
    // Predicated region
    $region2: #{tpu_custom_call.1} parent=1 // pred_check
      _
    $region3: #{tpu_custom_call.1} parent=1 // pred_check_branch
      %11 = sbr.rel (0) target = $region5
    $region4: #{tpu_custom_call.1} parent=1 // pred_region
      %s12 = sadd.s32 0, 0
      %p13 = scmp.lt.s32.totalorder %s12, 0
      %s14 = scalar_select %p13, %s12, 0
      %s15 = smul.addr %s14, 8
      %s16 = scalar_lea.vmem %s0, %s15
      %s17 = sadd.s32 0, 0
    $region5: #{tpu_custom_call.1} parent=1 // pred_fallthru
      _
    // Predicated region
    $region6: #{tpu_custom_call.1} parent=1 // pred_check
      _
    $region7: #{tpu_custom_call.1} parent=1 // pred_check_branch
      %19 = sbr.rel (0) target = $region9
    $region8: #{tpu_custom_call.1} parent=1 // pred_region
      %s20 = sadd.s32 0, 0
      %s22 = ssub.s32 128, 128
      %23 = vsyncadd [#allocation4], %s22
      %s24 = smul.addr %s20, 128
      %s25 = scalar_lea.hbm %s1, %s24
      %s27 = sshll.u32 [#allocation3], 4
      %s28 = int_to_ptr.vmem [resolvable:$true] %s27
      %30 = dma.hbm_to_vmem [thread:$0]  %s25, 128, %s28, [#allocation4]
    $region9: #{tpu_custom_call.1} parent=1 // pred_fallthru
      _
    // Predicated region
    $region10: #{tpu_custom_call.1} parent=1 // pred_check
      _
    $region11: #{tpu_custom_call.1} parent=1 // pred_check_branch
      %32 = sbr.rel (0) target = $region13
    $region12: #{tpu_custom_call.1} parent=1 // pred_region
      %s33 = sadd.s32 0, 0
      %p34 = scmp.lt.s32.totalorder %s33, 0
      %s35 = scalar_select %p34, %s33, 0
      %s36 = smul.addr %s35, 8
      %s37 = scalar_lea.vmem %s2, %s36
      %s38 = sadd.s32 0, 0
    $region13: #{tpu_custom_call.1} parent=1 // pred_fallthru
      _
    // Predicated region
    $region14: #{tpu_custom_call.1} parent=1 // pred_check
      _
    $region15: #{tpu_custom_call.1} parent=1 // pred_check_branch
      %40 = sbr.rel (0) target = $region17
    $region16: #{tpu_custom_call.1} parent=1 // pred_region
      %41 = dma.done [#allocation4], 128
    $region17: #{tpu_custom_call.1} parent=1 // pred_fallthru
      _
    %s42 = sadd.s32 0, 0
    %p43 = scmp.lt.s32.totalorder %s42, 0
    %s44 = scalar_select %p43, %s42, 0
    %s45 = smul.addr %s44, 8
    %s46 = scalar_lea.vmem %s0, %s45
    %s47 = sadd.s32 0, 0
    %p48 = scmp.lt.s32.totalorder %s47, 0
    %s49 = scalar_select %p48, %s47, 0
    %s50 = smul.addr %s49, 8
    %s51 = scalar_lea.vmem %s2, %s50
    %s52 = sadd.s32 0, 0
    %p53 = scmp.lt.s32.totalorder %s52, 0
    %s54 = scalar_select %p53, %s52, 0
    %s55 = smul.addr %s54, 8
    %s56 = scalar_lea.vmem %s0, %s55
    %s57 = sadd.s32 0, 0
    %s58 = sadd.s32 0, 0
    %s59 = sadd.s32 0, 0
    %p60 = scmp.lt.s32.totalorder %s59, 0
    %s61 = scalar_select %p60, %s59, 0
    %s62 = smul.addr %s61, 8
    %s63 = scalar_lea.vmem %s2, %s62
    %s64 = sadd.s32 0, 0
    %p65 = scmp.eq.s32.totalorder 0, 0
    // Predicated region
    $region18: #{tpu_custom_call.1} parent=1 // pred_check
      %p66 = pneg %p65
    $region19: #{tpu_custom_call.1} parent=1 // pred_check_branch
      %68 = sbr.rel (%p66) target = $region21
    $region20: #{tpu_custom_call.1} parent=1 // pred_region
      %s69 = scalar_lea.smem [#allocation2], 0
      %70 = sst [smem:[%s69]] 0.0
    $region21: #{tpu_custom_call.1} parent=1 // pred_fallthru
      _
    %v71 = vld [vmem:[%s56] sm:$0xff]
    %v72 = vld [vmem:[#allocation3] sm:$0xff]
    %v73 = vld [vmem:[%s63] sm:$0xff]
    %v74 = vsub.f32 %v71, %v72
    %v75 = vadd.f32 %v74, 1e-06
    %v76 = vmul.f32 %v75, %v75
    %vm77 = vcmask 261120
    %v78 = vsel %vm77, %v76, 0.0
    %79 = vadd.xlane.f32.xlu0 %v78
    %v80 = vpop.xlane.xlu0 %79
    %v81 = vrsqrt.pop %v80
    %v82 = vmul.f32 %v80, %v81
    %vm83 = vcmp.eq.f32.partialorder %v80, inf
    %v84 = vsel %vm83, %v80, %v82
    %vm85 = vcmp.eq.f32.partialorder %v80, 0.0
    %v86 = vand.u32 %v80, 2147483648
    %v87 = vsel %vm85, %v86, %v84
    %v88 = vsub.f32 2.0, %v87
    %v89 = vmax.f32 %v88, 0.0
    %v90 = vmul.f32 %v73, %v80
    %v91 = vsub.f32 1.0, %v73
    %v92 = vmul.f32 %v89, %v89
    %v93 = vmul.f32 %v91, %v92
    %v94 = vadd.f32 %v90, %v93
    %s95 = sld [smem:[#allocation2]]
    %vm96 = vcmask 7168
    %v97 = vsel %vm96, %v94, 0.0
    %98 = vadd.xlane.f32.xlu0 %v97
    %v99 = vpop.xlane.xlu0 %98
    %v100 = vrot.slane %v99, 4
    %v101 = vadd.f32 %v99, %v100
    %v102 = vrot.slane %v101, 2
    %v103 = vadd.f32 %v101, %v102
    %v104 = vrot.slane %v103, 1
    %v105 = vadd.f32 %v103, %v104
    %s106 = vtos %v105
    %s107 = sadd.f32 %s95, %s106
    %s108 = scalar_lea.smem [#allocation2], 0
    %109 = sst [smem:[%s108]] %s107
    // Predicated region
    $region22: #{tpu_custom_call.1} parent=1 // pred_check
      %p110 = pneg %p65
    $region23: #{tpu_custom_call.1} parent=1 // pred_check_branch
      %112 = sbr.rel (%p110) target = $region25
    $region24: #{tpu_custom_call.1} parent=1 // pred_region
      %s113 = sld [smem:[#allocation2]]
      %s114 = smul.f32 %s113, 0.125
      %v115 = vstv %s114
      %v116 = vadd.f32 %v115, 0.0
      %117 = vst [vmem:[#allocation6] sm:$0xff] %v116
    $region25: #{tpu_custom_call.1} parent=1 // pred_fallthru
      _
    // Predicated region
    $region26: #{tpu_custom_call.1} parent=1 // pred_check
      _
    $region27: #{tpu_custom_call.1} parent=1 // pred_check_branch
      %119 = sbr.rel (0) target = $region29
    $region28: #{tpu_custom_call.1} parent=1 // pred_region
      %s121 = ssub.s32 128, 128
      %122 = vsyncadd [#allocation5], %s121
      %s124 = sshll.u32 [#allocation6], 4
      %s125 = int_to_ptr.vmem [resolvable:$true] %s124
      %127 = dma.vmem_to_hbm [thread:$0]  %s125, 128, %s3, [#allocation5]
    $region29: #{tpu_custom_call.1} parent=1 // pred_fallthru
      _
    // Predicated region
    $region30: #{tpu_custom_call.1} parent=1 // pred_check
      _
    $region31: #{tpu_custom_call.1} parent=1 // pred_check_branch
      %129 = sbr.rel (0) target = $region33
    $region32: #{tpu_custom_call.1} parent=1 // pred_region
      %130 = dma.done [#allocation5], 128
    $region33: #{tpu_custom_call.1} parent=1 // pred_fallthru
      _
    %131 = vsyncpa [#allocation4], 1
    %132 = vsyncpa [#allocation5], 1

</llo_original>
